<compile_context>
chip_gen: v5e
topology: v5e:2x2
jax: 0.10.0
libtpu: 0.0.40
codegen_flags: <defaults>
</compile_context>

<pallas_src>
import functools
import math

import jax
import jax.numpy as jnp
from jax.experimental import pallas as pl
from jax.experimental.pallas import tpu as pltpu


# --------------------------- generation-aware sizing --------------------------------- #

def _vmem_capacity_bytes():
    try:
        cap = int(pltpu.get_tpu_info().vmem_capacity_bytes)
        if cap > 0:
            return cap
    except Exception:
        pass
    return 64 * 1024 * 1024  # conservative (v7x-sized) fallback


_VMEM_CAP = _vmem_capacity_bytes()
# ~25% headroom for compiler-internal scratch: 48 MiB on v7x (64 MiB VMEM),
# 96 MiB on v5e/v6e (128 MiB VMEM).
_VMEM_LIMIT = min((_VMEM_CAP * 3) // 4, 100 * 1024 * 1024)
# Bigger linear tiles on 128 MiB parts; conservative 512 tiles on v7x.
_LIN_TILE_MN = 1024 if _VMEM_CAP >= 96 * 1024 * 1024 else 512
_LIN_TILE_K = 512


def _sublane_align(dtype):
    """Sublane alignment for the second-to-last tile dim: 8 (f32), 16 (bf16), 32 (8b)."""
    return max(8, 32 // jnp.dtype(dtype).itemsize)


def _pick_tile(dim, target, align):
    """Largest tile <= target that divides dim and respects alignment (or full dim).
    NOTE: falls back to the full dimension when no aligned divisor exists; for very
    large awkwardly-factored dims, pad the input instead of relying on this fallback."""
    if dim <= target:
        return dim
    t = (target // align) * align
    while t >= align:
        if dim % t == 0:
            return t
        t -= align
    return dim


def _heads_per_group(nhead, d_k):
    """Group heads so the attention block's last dim (hpg*d_k) is lane-dense (~128)."""
    hpg = max(1, min(nhead, 128 // max(d_k, 1)))
    while nhead % hpg:
        hpg -= 1
    return hpg


# ----------------------- Tiled linear (G fused projections, x read once) ------------- #

def _linear_kernel(x_ref, w_ref, b_ref, o_ref, acc_ref, *, n_groups, compute_dtype):
    k_idx = pl.program_id(2)

    @pl.when(k_idx == 0)
    def _init():
        acc_ref[...] = jnp.zeros(acc_ref.shape, acc_ref.dtype)

    x = x_ref[...].astype(compute_dtype)                         # (tm, tk), loaded once
    for g in range(n_groups):                                    # tiny, unrolled
        acc_ref[g] += jnp.dot(x, w_ref[g].astype(compute_dtype),
                              preferred_element_type=jnp.float32)

    @pl.when(k_idx == pl.num_programs(2) - 1)
    def _finalize():
        for g in range(n_groups):
            o_ref[g] = (acc_ref[g] + b_ref[g].astype(jnp.float32)).astype(o_ref.dtype)


def pallas_linear(x2d, w3, b2, *, compute_dtype=jnp.bfloat16, out_dtype=None,
                  m_tile=None, n_tile=None, k_tile=None, vmem_limit=None):
    """x2d: (M, K).  w3: (G, K, N) already transposed (x @ W layout).  b2: (G, N).
    Returns (G, M, N): G projections of the same x, fused so x is DMA'd once per tile."""
    M, K = x2d.shape
    G, K2, N = w3.shape
    assert K == K2 and b2.shape == (G, N)
    if out_dtype is None:
        out_dtype = compute_dtype
    if vmem_limit is None:
        vmem_limit = _VMEM_LIMIT
    if m_tile is None:
        m_tile = _LIN_TILE_MN
    if n_tile is None:
        n_tile = _LIN_TILE_MN
    if k_tile is None:
        k_tile = _LIN_TILE_K

    # Store the activation in the MXU-operand dtype so tile DMAs move bf16 bytes.
    if x2d.dtype != compute_dtype:
        x2d = x2d.astype(compute_dtype)

    tm = _pick_tile(M, m_tile, _sublane_align(compute_dtype))
    tn = _pick_tile(N, n_tile, 128)
    tk = _pick_tile(K, k_tile, 128)
    grid = (M // tm, N // tn, K // tk)   # M outermost parallel -> v7x megacore balance

    kernel = functools.partial(_linear_kernel, n_groups=G, compute_dtype=compute_dtype)

    return pl.pallas_call(
        kernel,
        out_shape=jax.ShapeDtypeStruct((G, M, N), out_dtype),
        grid_spec=pltpu.PrefetchScalarGridSpec(
            num_scalar_prefetch=0,
            grid=grid,
            in_specs=[
                pl.BlockSpec((tm, tk), lambda i, j, k: (i, k)),
                pl.BlockSpec((G, tk, tn), lambda i, j, k: (0, k, j)),
                pl.BlockSpec((G, 1, tn), lambda i, j, k: (0, 0, j)),
            ],
            out_specs=pl.BlockSpec((G, tm, tn), lambda i, j, k: (0, i, j)),
            scratch_shapes=[pltpu.VMEM((G, tm, tn), jnp.float32)]),
        compiler_params=pltpu.CompilerParams(
            dimension_semantics=("parallel", "parallel", "arbitrary"),
            vmem_limit_bytes=vmem_limit),
    )(x2d, w3, b2.reshape(G, 1, N))


# ----------------------------- Flash-style multi-head attention ---------------------- #

def _flash_mha_kernel(q_ref, k_ref, v_ref, o_ref, m_ref, l_ref, acc_ref,
                      *, hpg, d_k, compute_dtype, exp_dtype, approx_recip):
    ki = pl.program_id(3)

    @pl.when(ki == 0)
    def _init():
        m_ref[...] = jnp.full(m_ref.shape, -jnp.inf, m_ref.dtype)
        l_ref[...] = jnp.zeros(l_ref.shape, l_ref.dtype)
        acc_ref[...] = jnp.zeros(acc_ref.shape, acc_ref.dtype)

    # TODO(synk): mask path (scores.masked_fill(mask == 0, 1e-09)) not implemented.
    # Dropout(p=0.1) on the attention probabilities is eval-mode identity.
    # TODO(synk): the per-head d_k-wide lane slices below still cost an XLU relayout
    # when d_k < 128; a (3, B, nhead, S, d_k) QKV layout would make this leading-dim
    # indexing at the price of a wrapper-side transpose.

    for h in range(hpg):                                   # hpg <= 128//d_k, unrolled
        lo, hi = h * d_k, (h + 1) * d_k
        q = q_ref[0, 0, :, lo:hi].astype(compute_dtype)    # (tq,  d_k)
        k = k_ref[0, 0, :, lo:hi].astype(compute_dtype)    # (tkv, d_k)
        v = v_ref[0, 0, :, lo:hi].astype(compute_dtype)    # (tkv, d_k)

        # q @ k^T without an explicit transpose; 1/sqrt(d_k) is pre-folded into the
        # query projection weights, so no score scaling is needed here.
        s = jax.lax.dot_general(q, k, (((1,), (1,)), ((), ())),
                                preferred_element_type=jnp.float32)   # (tq, tkv) f32

        m_prev = m_ref[h]                                  # (tq, 1) f32
        m_new = jnp.maximum(m_prev, jnp.max(s, axis=-1, keepdims=True))
        alpha = jnp.exp(m_prev - m_new)
        # exp_dtype=bf16 is profitable on v6e/v7x (bf16 EUP); keep f32 on v5e.
        p = jnp.exp((s - m_new).astype(exp_dtype))
        # TODO(synk): the row sum could ride the MXU (p @ ones column) to offload the
        # VPU/XLU when tkv is large; kept as a vector reduction for robustness.
        l_ref[h] = alpha * l_ref[h] + jnp.sum(p.astype(jnp.float32),
                                              axis=-1, keepdims=True)
        acc_ref[h] = alpha * acc_ref[h] + jnp.dot(
            p.astype(compute_dtype), v, preferred_element_type=jnp.float32)
        m_ref[h] = m_new

    @pl.when(ki == pl.num_programs(3) - 1)
    def _finalize():
        # Lane-dense epilogue: normalize each head's accumulator, then ONE full-width
        # (tq, hpg*d_k) store instead of hpg masked d_k-wide stores.
        parts = []
        for h in range(hpg):
            inv_l = pl.reciprocal(l_ref[h], approx=approx_recip)
            parts.append(acc_ref[h] * inv_l)               # (tq, d_k) f32
        slab = parts[0] if hpg == 1 else jnp.concatenate(parts, axis=-1)
        o_ref[0] = slab.astype(o_ref.dtype)


def pallas_flash_mha(qkv, nhead, *, compute_dtype=None, exp_dtype=jnp.float32,
                     approx_recip=True, q_tile=1024, kv_tile=1024, vmem_limit=None):
    """qkv: (3, B, S, d_model) stacked projected Q/K/V.  Returns (B, S, d_model)."""
    three, B, S, d_model = qkv.shape
    assert three == 3 and d_model % nhead == 0
    if compute_dtype is None:
        compute_dtype = qkv.dtype
    if vmem_limit is None:
        vmem_limit = _VMEM_LIMIT

    d_k = d_model // nhead
    hpg = _heads_per_group(nhead, d_k)        # heads per block -> lane-dense last dim
    gw = hpg * d_k
    align = _sublane_align(qkv.dtype)
    tq = _pick_tile(S, q_tile, align)
    tkv = _pick_tile(S, kv_tile, align)
    grid = (B, nhead // hpg, S // tq, S // tkv)

    kernel = functools.partial(_flash_mha_kernel, hpg=hpg, d_k=d_k,
                               compute_dtype=compute_dtype, exp_dtype=exp_dtype,
                               approx_recip=approx_recip)

    # TODO(synk): on v5e, pipeline_mode=pl.Buffered(3) on k/v specs can hide exposed DMA.
    q_spec = pl.BlockSpec((1, 1, tq, gw), lambda b, h, qi, ki: (0, b, qi, h))
    k_spec = pl.BlockSpec((1, 1, tkv, gw), lambda b, h, qi, ki: (1, b, ki, h))
    v_spec = pl.BlockSpec((1, 1, tkv, gw), lambda b, h, qi, ki: (2, b, ki, h))
    o_spec = pl.BlockSpec((1, tq, gw), lambda b, h, qi, ki: (b, qi, h))

    return pl.pallas_call(
        kernel,
        out_shape=jax.ShapeDtypeStruct((B, S, d_model), qkv.dtype),
        grid_spec=pltpu.PrefetchScalarGridSpec(
            num_scalar_prefetch=0,
            grid=grid,
            in_specs=[q_spec, k_spec, v_spec],
            out_specs=o_spec,
            scratch_shapes=[
                pltpu.VMEM((hpg, tq, 1), jnp.float32),      # running max m
                pltpu.VMEM((hpg, tq, 1), jnp.float32),      # running sum l
                pltpu.VMEM((hpg, tq, d_k), jnp.float32),    # output accumulator
            ]),
        compiler_params=pltpu.CompilerParams(
            dimension_semantics=("parallel", "parallel", "parallel", "arbitrary"),
            vmem_limit_bytes=vmem_limit),
    )(qkv, qkv, qkv)


# ------------------------------ Module wrapper --------------------------------------- #

def init_mha_params(key, d_model):
    """Deterministic PyTorch-style init: uniform(-1/sqrt(fan_in), 1/sqrt(fan_in)).
    Weights stored as (in_features, out_features) (already transposed vs PyTorch)."""
    bound = 1.0 / math.sqrt(d_model)
    params = {}
    names = ["query", "key", "value", "out"]
    keys = jax.random.split(key, 2 * len(names))
    for i, name in enumerate(names):
        wk, bk = keys[2 * i], keys[2 * i + 1]
        params[name + "_w"] = jax.random.uniform(
            wk, (d_model, d_model), jnp.float32, -bound, bound)
        params[name + "_b"] = jax.random.uniform(
            bk, (d_model,), jnp.float32, -bound, bound)
    return params


def fuse_mha_params(params, d_model, nhead, param_dtype=jnp.bfloat16):
    """Fuse Q/K/V weights into (3, d_model, d_model), fold 1/sqrt(d_k) into Q, and
    store in param_dtype (bf16 default -> halved weight HBM/DMA traffic)."""
    d_k = d_model // nhead
    scale = 1.0 / math.sqrt(d_k)
    qkv_w = jnp.stack([params["query_w"] * scale, params["key_w"], params["value_w"]], 0)
    qkv_b = jnp.stack([params["query_b"] * scale, params["key_b"], params["value_b"]], 0)
    return {
        "qkv_w": qkv_w.astype(param_dtype),                 # (3, d_model, d_model)
        "qkv_b": qkv_b.astype(param_dtype),                 # (3, d_model)
        "out_w": params["out_w"][None].astype(param_dtype), # (1, d_model, d_model)
        "out_b": params["out_b"][None].astype(param_dtype), # (1, d_model)
    }


def multi_head_attention(fused, query, key, value, nhead, *,
                         compute_dtype=jnp.bfloat16, exp_dtype=jnp.float32,
                         approx_recip=True):
    """query/key/value: (B, S, d_model).  Returns (B, S, d_model) in query.dtype."""
    B, S, d_model = query.shape
    # TODO(synk): differing key/value sequence lengths not supported by the stacked
    # (3, B, S, d_model) attention layout; the module's typical self-attn use matches.
    assert key.shape == query.shape and value.shape == query.shape
    M = B * S
    out_dtype = query.dtype

    if (query is key) and (key is value):
        # Self-attention: one fused QKV pass (activation read once, G folded in-kernel).
        qkv = pallas_linear(query.reshape(M, d_model), fused["qkv_w"], fused["qkv_b"],
                            compute_dtype=compute_dtype)              # (3, M, d_model)
    else:
        q_p = pallas_linear(query.reshape(M, d_model), fused["qkv_w"][0:1],
                            fused["qkv_b"][0:1], compute_dtype=compute_dtype)
        if key is value:
            # Encoder-decoder cross attention: fuse K and V projections (G=2),
            # reading the encoder activation once.
            kv_p = pallas_linear(key.reshape(M, d_model), fused["qkv_w"][1:3],
                                 fused["qkv_b"][1:3], compute_dtype=compute_dtype)
            qkv = jnp.concatenate([q_p, kv_p], axis=0)
        else:
            k_p = pallas_linear(key.reshape(M, d_model), fused["qkv_w"][1:2],
                                fused["qkv_b"][1:2], compute_dtype=compute_dtype)
            v_p = pallas_linear(value.reshape(M, d_model), fused["qkv_w"][2:3],
                                fused["qkv_b"][2:3], compute_dtype=compute_dtype)
            qkv = jnp.concatenate([q_p, k_p, v_p], axis=0)

    qkv = qkv.reshape(3, B, S, d_model)   # metadata reshape only; heads are split
                                          # inside the attention kernel (no transposes)
    ctx = pallas_flash_mha(qkv, nhead, compute_dtype=compute_dtype,
                           exp_dtype=exp_dtype, approx_recip=approx_recip)

    out = pallas_linear(ctx.reshape(M, d_model), fused["out_w"], fused["out_b"],
                        compute_dtype=compute_dtype, out_dtype=out_dtype)
    return out.reshape(B, S, d_model)


# Pure-JAX reference for sanity checking (mirrors the PyTorch module, eval mode).
def reference_mha(params, query, key, value, nhead):
    B, S, d_model = query.shape
    d_k = d_model // nhead

    def proj(x, name):
        y = x.reshape(B * S, d_model) @ params[name + "_w"] + params[name + "_b"]
        return y.reshape(B, S, nhead, d_k).transpose(0, 2, 1, 3)

    q, k, v = proj(query, "query"), proj(key, "key"), proj(value, "value")
    scores = jnp.einsum("bhqd,bhkd->bhqk", q, k) / math.sqrt(d_k)
    p = jax.nn.softmax(scores, axis=-1)
    x = jnp.einsum("bhqk,bhkd->bhqd", p, v)
    x = x.transpose(0, 2, 1, 3).reshape(B * S, d_model)
    out = x @ params["out_w"] + params["out_b"]
    return out.reshape(B, S, d_model)


if __name__ == "__main__":
    B, S, d_model, nhead = 2, 8, 32, 4

    root = jax.random.PRNGKey(0)
    k_params, k_q, k_k, k_v = jax.random.split(root, 4)
    params = init_mha_params(k_params, d_model)
    fused_f32 = fuse_mha_params(params, d_model, nhead, param_dtype=jnp.float32)
    fused_bf16 = fuse_mha_params(params, d_model, nhead)        # bf16 default

    x = jax.random.normal(k_q, (B, S, d_model), jnp.float32)
    ref = reference_mha(params, x, x, x, nhead)

    # 1) Strict f32 path (exact parity): self-attention, fused QKV, exact reciprocal.
    out = jax.block_until_ready(
        multi_head_attention(fused_f32, x, x, x, nhead,
                             compute_dtype=jnp.float32, approx_recip=False))
    assert out.shape == (B, S, d_model)
    assert jnp.allclose(out, ref, atol=1e-5, rtol=1e-5), "fused self-attn mismatch"

    # 2) Cross-attention with distinct q/k/v (three G=1 projection calls), f32 strict.
    k_in = jax.random.normal(k_k, (B, S, d_model), jnp.float32)
    v_in = jax.random.normal(k_v, (B, S, d_model), jnp.float32)
    out_x = jax.block_until_ready(
        multi_head_attention(fused_f32, x, k_in, v_in, nhead,
                             compute_dtype=jnp.float32, approx_recip=False))
    ref_x = reference_mha(params, x, k_in, v_in, nhead)
    assert jnp.allclose(out_x, ref_x, atol=1e-5, rtol=1e-5), "cross-attn mismatch"

    # 3) Encoder-decoder style (key is value): exercises the fused G=2 KV projection.
    out_kv = jax.block_until_ready(
        multi_head_attention(fused_f32, x, k_in, k_in, nhead,
                             compute_dtype=jnp.float32, approx_recip=False))
    ref_kv = reference_mha(params, x, k_in, k_in, nhead)
    assert jnp.allclose(out_kv, ref_kv, atol=1e-5, rtol=1e-5), "enc-dec attn mismatch"

    # 4) Default fast path: bf16 weights/activations/MXU operands, f32 accumulation,
    #    approx EUP reciprocal (looser numeric check).
    out_fast = jax.block_until_ready(multi_head_attention(fused_bf16, x, x, x, nhead))
    assert out_fast.shape == (B, S, d_model) and out_fast.dtype == x.dtype
    assert jnp.allclose(out_fast, ref, atol=5e-2, rtol=5e-2), "bf16 fast path mismatch"

    print("KERNEL_OK")
</pallas_src>

<mosaic_0001>
module attributes {stable_mosaic.version = 11 : i64} {
  func.func @_linear_kernel(%arg0: i32, %arg1: i32, %arg2: i32, %arg3: memref<16x32xf32, #tpu.memory_space<vmem>>, %arg4: memref<3x32x32xf32, #tpu.memory_space<vmem>>, %arg5: memref<3x1x32xf32, #tpu.memory_space<vmem>>, %arg6: memref<3x16x32xf32, #tpu.memory_space<vmem>>, %arg7: memref<3x16x32xf32, #tpu.memory_space<vmem>>) attributes {dimension_semantics = [#tpu.dimension_semantics<parallel>, #tpu.dimension_semantics<parallel>, #tpu.dimension_semantics<arbitrary>], iteration_bounds = array<i64: 1, 1, 1>, scalar_prefetch = 0 : i64, scratch_operands = 1 : i64, tpu.core_type = #tpu.core_type<tc>, window_params = [{transform_indices = @transform_0, window_bounds = array<i64: 16, 32>}, {transform_indices = @transform_1, window_bounds = array<i64: 3, 32, 32>}, {transform_indices = @transform_2, window_bounds = array<i64: 3, 1, 32>}, {transform_indices = @transform_3, window_bounds = array<i64: 3, 16, 32>}]} {
    %c0_i32 = arith.constant 0 : i32
    %0 = arith.cmpi eq, %arg2, %c0_i32 : i32
    %1 = arith.extui %0 : i1 to i32
    %c0_i32_0 = arith.constant 0 : i32
    %2 = arith.cmpi ne, %1, %c0_i32_0 : i32
    scf.if %2 {
      %cst_31 = arith.constant 0.000000e+00 : f32
      %34 = vector.broadcast %cst_31 : f32 to vector<3x16x32xf32>
      %c0_32 = arith.constant 0 : index
      %c0_33 = arith.constant 0 : index
      %c0_34 = arith.constant 0 : index
      %35 = vector.load %arg7[%c0_32, %c0_33, %c0_34] : memref<3x16x32xf32, #tpu.memory_space<vmem>>, vector<3x16x32xf32>
      tpu.vector_store %arg7[%c0_32, %c0_33, %c0_34], %34 {strides = array<i32>} : memref<3x16x32xf32, #tpu.memory_space<vmem>>, vector<3x16x32xf32>,
    } else {
    }
    %c0 = arith.constant 0 : index
    %c0_1 = arith.constant 0 : index
    %3 = vector.load %arg3[%c0, %c0_1] : memref<16x32xf32, #tpu.memory_space<vmem>>, vector<16x32xf32>
    %c0_2 = arith.constant 0 : index
    %c0_3 = arith.constant 0 : index
    %c0_4 = arith.constant 0 : index
    %4 = vector.load %arg7[%c0_2, %c0_3, %c0_4] : memref<3x16x32xf32, #tpu.memory_space<vmem>>, vector<1x16x32xf32>
    %5 = vector.shape_cast %4 : vector<1x16x32xf32> to vector<16x32xf32>
    %c0_5 = arith.constant 0 : index
    %c0_6 = arith.constant 0 : index
    %c0_7 = arith.constant 0 : index
    %6 = vector.load %arg4[%c0_5, %c0_6, %c0_7] : memref<3x32x32xf32, #tpu.memory_space<vmem>>, vector<1x32x32xf32>
    %7 = vector.shape_cast %6 : vector<1x32x32xf32> to vector<32x32xf32>
    %cst = arith.constant dense<0.000000e+00> : vector<16x32xf32>
    %8 = tpu.matmul %3, %7, %cst {dimension_numbers = #tpu.dot_dimension_numbers<[1], [0], [0], [1], [0, 0, 1, 1], [], []>} : vector<16x32xf32>, vector<32x32xf32>, vector<16x32xf32> -> vector<16x32xf32>
    %9 = arith.addf %5, %8 : vector<16x32xf32>
    %c0_8 = arith.constant 0 : index
    %c0_9 = arith.constant 0 : index
    %c0_10 = arith.constant 0 : index
    %10 = vector.load %arg7[%c0_8, %c0_9, %c0_10] : memref<3x16x32xf32, #tpu.memory_space<vmem>>, vector<1x16x32xf32>
    %11 = vector.shape_cast %10 : vector<1x16x32xf32> to vector<16x32xf32>
    %12 = vector.shape_cast %9 : vector<16x32xf32> to vector<1x16x32xf32>
    tpu.vector_store %arg7[%c0_8, %c0_9, %c0_10], %12 {strides = array<i32>} : memref<3x16x32xf32, #tpu.memory_space<vmem>>, vector<1x16x32xf32>,
    %c1 = arith.constant 1 : index
    %c0_11 = arith.constant 0 : index
    %c0_12 = arith.constant 0 : index
    %13 = vector.load %arg7[%c1, %c0_11, %c0_12] : memref<3x16x32xf32, #tpu.memory_space<vmem>>, vector<1x16x32xf32>
    %14 = vector.shape_cast %13 : vector<1x16x32xf32> to vector<16x32xf32>
    %c1_13 = arith.constant 1 : index
    %c0_14 = arith.constant 0 : index
    %c0_15 = arith.constant 0 : index
    %15 = vector.load %arg4[%c1_13, %c0_14, %c0_15] : memref<3x32x32xf32, #tpu.memory_space<vmem>>, vector<1x32x32xf32>
    %16 = vector.shape_cast %15 : vector<1x32x32xf32> to vector<32x32xf32>
    %cst_16 = arith.constant dense<0.000000e+00> : vector<16x32xf32>
    %17 = tpu.matmul %3, %16, %cst_16 {dimension_numbers = #tpu.dot_dimension_numbers<[1], [0], [0], [1], [0, 0, 1, 1], [], []>} : vector<16x32xf32>, vector<32x32xf32>, vector<16x32xf32> -> vector<16x32xf32>
    %18 = arith.addf %14, %17 : vector<16x32xf32>
    %c1_17 = arith.constant 1 : index
    %c0_18 = arith.constant 0 : index
    %c0_19 = arith.constant 0 : index
    %19 = vector.load %arg7[%c1_17, %c0_18, %c0_19] : memref<3x16x32xf32, #tpu.memory_space<vmem>>, vector<1x16x32xf32>
    %20 = vector.shape_cast %19 : vector<1x16x32xf32> to vector<16x32xf32>
    %21 = vector.shape_cast %18 : vector<16x32xf32> to vector<1x16x32xf32>
    tpu.vector_store %arg7[%c1_17, %c0_18, %c0_19], %21 {strides = array<i32>} : memref<3x16x32xf32, #tpu.memory_space<vmem>>, vector<1x16x32xf32>,
    %c2 = arith.constant 2 : index
    %c0_20 = arith.constant 0 : index
    %c0_21 = arith.constant 0 : index
    %22 = vector.load %arg7[%c2, %c0_20, %c0_21] : memref<3x16x32xf32, #tpu.memory_space<vmem>>, vector<1x16x32xf32>
    %23 = vector.shape_cast %22 : vector<1x16x32xf32> to vector<16x32xf32>
    %c2_22 = arith.constant 2 : index
    %c0_23 = arith.constant 0 : index
    %c0_24 = arith.constant 0 : index
    %24 = vector.load %arg4[%c2_22, %c0_23, %c0_24] : memref<3x32x32xf32, #tpu.memory_space<vmem>>, vector<1x32x32xf32>
    %25 = vector.shape_cast %24 : vector<1x32x32xf32> to vector<32x32xf32>
    %cst_25 = arith.constant dense<0.000000e+00> : vector<16x32xf32>
    %26 = tpu.matmul %3, %25, %cst_25 {dimension_numbers = #tpu.dot_dimension_numbers<[1], [0], [0], [1], [0, 0, 1, 1], [], []>} : vector<16x32xf32>, vector<32x32xf32>, vector<16x32xf32> -> vector<16x32xf32>
    %27 = arith.addf %23, %26 : vector<16x32xf32>
    %c2_26 = arith.constant 2 : index
    %c0_27 = arith.constant 0 : index
    %c0_28 = arith.constant 0 : index
    %28 = vector.load %arg7[%c2_26, %c0_27, %c0_28] : memref<3x16x32xf32, #tpu.memory_space<vmem>>, vector<1x16x32xf32>
    %29 = vector.shape_cast %28 : vector<1x16x32xf32> to vector<16x32xf32>
    %30 = vector.shape_cast %27 : vector<16x32xf32> to vector<1x16x32xf32>
    tpu.vector_store %arg7[%c2_26, %c0_27, %c0_28], %30 {strides = array<i32>} : memref<3x16x32xf32, #tpu.memory_space<vmem>>, vector<1x16x32xf32>,
    %c0_i32_29 = arith.constant 0 : i32
    %31 = arith.cmpi eq, %arg2, %c0_i32_29 : i32
    %32 = arith.extui %31 : i1 to i32
    %c0_i32_30 = arith.constant 0 : i32
    %33 = arith.cmpi ne, %32, %c0_i32_30 : i32
    scf.if %33 {
      %c0_31 = arith.constant 0 : index
      %c0_32 = arith.constant 0 : index
      %c0_33 = arith.constant 0 : index
      %34 = vector.load %arg7[%c0_31, %c0_32, %c0_33] : memref<3x16x32xf32, #tpu.memory_space<vmem>>, vector<1x16x32xf32>
      %35 = vector.shape_cast %34 : vector<1x16x32xf32> to vector<16x32xf32>
      %c0_34 = arith.constant 0 : index
      %c0_35 = arith.constant 0 : index
      %c0_36 = arith.constant 0 : index
      %36 = vector.load %arg5[%c0_34, %c0_35, %c0_36] : memref<3x1x32xf32, #tpu.memory_space<vmem>>, vector<1x1x32xf32>
      %37 = vector.shape_cast %36 : vector<1x1x32xf32> to vector<1x32xf32>
      %38 = vector.broadcast %37 : vector<1x32xf32> to vector<16x32xf32>
      %39 = arith.addf %35, %38 : vector<16x32xf32>
      %c0_37 = arith.constant 0 : index
      %c0_38 = arith.constant 0 : index
      %c0_39 = arith.constant 0 : index
      %40 = vector.load %arg6[%c0_37, %c0_38, %c0_39] : memref<3x16x32xf32, #tpu.memory_space<vmem>>, vector<1x16x32xf32>
      %41 = vector.shape_cast %40 : vector<1x16x32xf32> to vector<16x32xf32>
      %42 = vector.shape_cast %39 : vector<16x32xf32> to vector<1x16x32xf32>
      tpu.vector_store %arg6[%c0_37, %c0_38, %c0_39], %42 {strides = array<i32>} : memref<3x16x32xf32, #tpu.memory_space<vmem>>, vector<1x16x32xf32>,
      %c1_40 = arith.constant 1 : index
      %c0_41 = arith.constant 0 : index
      %c0_42 = arith.constant 0 : index
      %43 = vector.load %arg7[%c1_40, %c0_41, %c0_42] : memref<3x16x32xf32, #tpu.memory_space<vmem>>, vector<1x16x32xf32>
      %44 = vector.shape_cast %43 : vector<1x16x32xf32> to vector<16x32xf32>
      %c1_43 = arith.constant 1 : index
      %c0_44 = arith.constant 0 : index
      %c0_45 = arith.constant 0 : index
      %45 = vector.load %arg5[%c1_43, %c0_44, %c0_45] : memref<3x1x32xf32, #tpu.memory_space<vmem>>, vector<1x1x32xf32>
      %46 = vector.shape_cast %45 : vector<1x1x32xf32> to vector<1x32xf32>
      %47 = vector.broadcast %46 : vector<1x32xf32> to vector<16x32xf32>
      %48 = arith.addf %44, %47 : vector<16x32xf32>
      %c1_46 = arith.constant 1 : index
      %c0_47 = arith.constant 0 : index
      %c0_48 = arith.constant 0 : index
      %49 = vector.load %arg6[%c1_46, %c0_47, %c0_48] : memref<3x16x32xf32, #tpu.memory_space<vmem>>, vector<1x16x32xf32>
      %50 = vector.shape_cast %49 : vector<1x16x32xf32> to vector<16x32xf32>
      %51 = vector.shape_cast %48 : vector<16x32xf32> to vector<1x16x32xf32>
      tpu.vector_store %arg6[%c1_46, %c0_47, %c0_48], %51 {strides = array<i32>} : memref<3x16x32xf32, #tpu.memory_space<vmem>>, vector<1x16x32xf32>,
      %c2_49 = arith.constant 2 : index
      %c0_50 = arith.constant 0 : index
      %c0_51 = arith.constant 0 : index
      %52 = vector.load %arg7[%c2_49, %c0_50, %c0_51] : memref<3x16x32xf32, #tpu.memory_space<vmem>>, vector<1x16x32xf32>
      %53 = vector.shape_cast %52 : vector<1x16x32xf32> to vector<16x32xf32>
      %c2_52 = arith.constant 2 : index
      %c0_53 = arith.constant 0 : index
      %c0_54 = arith.constant 0 : index
      %54 = vector.load %arg5[%c2_52, %c0_53, %c0_54] : memref<3x1x32xf32, #tpu.memory_space<vmem>>, vector<1x1x32xf32>
      %55 = vector.shape_cast %54 : vector<1x1x32xf32> to vector<1x32xf32>
      %56 = vector.broadcast %55 : vector<1x32xf32> to vector<16x32xf32>
      %57 = arith.addf %53, %56 : vector<16x32xf32>
      %c2_55 = arith.constant 2 : index
      %c0_56 = arith.constant 0 : index
      %c0_57 = arith.constant 0 : index
      %58 = vector.load %arg6[%c2_55, %c0_56, %c0_57] : memref<3x16x32xf32, #tpu.memory_space<vmem>>, vector<1x16x32xf32>
      %59 = vector.shape_cast %58 : vector<1x16x32xf32> to vector<16x32xf32>
      %60 = vector.shape_cast %57 : vector<16x32xf32> to vector<1x16x32xf32>
      tpu.vector_store %arg6[%c2_55, %c0_56, %c0_57], %60 {strides = array<i32>} : memref<3x16x32xf32, #tpu.memory_space<vmem>>, vector<1x16x32xf32>,
    } else {
    }
    return
  }
  func.func @transform_0(%arg0: i32, %arg1: i32, %arg2: i32) -> (i32, i32) {
    %c0_i32 = arith.constant 0 : i32
    return %arg0, %arg2 : i32, i32
  }
  func.func @transform_1(%arg0: i32, %arg1: i32, %arg2: i32) -> (i32, i32, i32) {
    %c0_i32 = arith.constant 0 : i32
    %c0_i32_0 = arith.constant 0 : i32
    return %c0_i32, %arg2, %arg1 : i32, i32, i32
  }
  func.func @transform_2(%arg0: i32, %arg1: i32, %arg2: i32) -> (i32, i32, i32) {
    %c0_i32 = arith.constant 0 : i32
    %c0_i32_0 = arith.constant 0 : i32
    %c0_i32_1 = arith.constant 0 : i32
    return %c0_i32, %c0_i32_0, %arg1 : i32, i32, i32
  }
  func.func @transform_3(%arg0: i32, %arg1: i32, %arg2: i32) -> (i32, i32, i32) {
    %c0_i32 = arith.constant 0 : i32
    %c0_i32_0 = arith.constant 0 : i32
    return %c0_i32, %arg0, %arg1 : i32, i32, i32
  }
}

</mosaic_0001>

<llo_original>
// kernel: tpu_custom_call.1
$region0: #{tpu_custom_call.1}
  #allocation0 [shape = 'u32[]', space=smem, size = 0x4, offset = 0x4, fixed_abs, tag = 'smem constant byte address 0x4 - core index']
  #allocation1 [shape = 'u32[72,128]{1,0:T(1,128)}', space=vmem, size = 0x9000, scoped, tag = 'internal scratch']
  #allocation2 [shape = 'f32[3,16,32]{2,1,0:T(8,128)}', space=vmem, size = 0x6000, scoped, tag = 'scratch operand']
  %s0 = inlined_call_operand.hbm [shape: f32[16,32], index: 0, kind: input, shape index: {}]
  %s1 = inlined_call_operand.hbm [shape: f32[3,32,32], index: 1, kind: input, shape index: {}]
  %s2 = inlined_call_operand.hbm [shape: f32[3,1,32], index: 2, kind: input, shape index: {}]
  %s3 = inlined_call_operand.hbm [shape: f32[3,16,32], index: 3, kind: output, shape index: {}]
  %s4 = sld [smem:[#allocation0]]
  $region42: #{tpu_custom_call.1} parent=0
    _
  %s6 = ssub.s32 1, %s4
  %s7 = scalar_select 0, %s6, %s4
  $region1: #{tpu_custom_call.1} parent=0
    #allocation3 [shape = 'u8[8192]{0}', space=vmem, size = 0x2000, scoped, tag = 'input window, operand 0, single buffered']
    #allocation4 [shape = 's32[1]{0}', space=sflag, size = 0x4, scoped, tag = 'scoped memory for tpu_custom_call.1']
    #allocation5 [shape = 's32[1]{0}', space=sflag, size = 0x4, scoped, tag = 'scoped memory for tpu_custom_call.1']
    #allocation6 [shape = 'u8[49152]{0}', space=vmem, size = 0xc000, scoped, tag = 'input window, operand 1, single buffered']
    #allocation7 [shape = 's32[1]{0}', space=sflag, size = 0x4, scoped, tag = 'scoped memory for tpu_custom_call.1']
    #allocation8 [shape = 'u8[1536]{0}', space=vmem, size = 0x800, scoped, tag = 'input window, operand 2, single buffered']
    #allocation9 [shape = 'u8[24576]{0}', space=vmem, size = 0x6000, scoped, tag = 'output window, operand 0, single buffered']
    %8 = vsyncpa [#allocation4], 0
    %9 = vsyncpa [#allocation7], 0
    %10 = vsyncpa [#allocation5], 0
    // Predicated region
    $region2: #{tpu_custom_call.1} parent=1 // pred_check
      _
    $region3: #{tpu_custom_call.1} parent=1 // pred_check_branch
      %12 = sbr.rel (0) target = $region5
    $region4: #{tpu_custom_call.1} parent=1 // pred_region
      %14 = vsyncadd [#allocation4], 0
      %s15 = sshll.u32 %s0, 4
      %s16 = int_to_ptr.hbm [resolvable:$true] %s15
      %s17 = sshll.u32 [#allocation3], 4
      %s18 = int_to_ptr.vmem [resolvable:$true] %s17
      %23 = dma.hbm_to_vmem [thread:$0]  %s16, 256, %s18, [#allocation4], 128, 128, 8
    $region5: #{tpu_custom_call.1} parent=1 // pred_fallthru
      _
    // Predicated region
    $region6: #{tpu_custom_call.1} parent=1 // pred_check
      _
    $region7: #{tpu_custom_call.1} parent=1 // pred_check_branch
      %25 = sbr.rel (0) target = $region9
    $region8: #{tpu_custom_call.1} parent=1 // pred_region
      %27 = vsyncadd [#allocation7], 0
      %s28 = sshll.u32 %s1, 4
      %s29 = int_to_ptr.hbm [resolvable:$true] %s28
      %s30 = sshll.u32 [#allocation6], 4
      %s31 = int_to_ptr.vmem [resolvable:$true] %s30
      %36 = dma.hbm_to_vmem [thread:$0]  %s29, 1536, %s31, [#allocation7], 128, 128, 8
    $region9: #{tpu_custom_call.1} parent=1 // pred_fallthru
      _
    // Predicated region
    $region10: #{tpu_custom_call.1} parent=1 // pred_check
      _
    $region11: #{tpu_custom_call.1} parent=1 // pred_check_branch
      %38 = sbr.rel (0) target = $region13
    $region12: #{tpu_custom_call.1} parent=1 // pred_region
      %40 = vsyncadd [#allocation7], 0
      %s41 = sshll.u32 %s2, 4
      %s42 = int_to_ptr.hbm [resolvable:$true] %s41
      %s43 = sshll.u32 [#allocation8], 4
      %s44 = int_to_ptr.vmem [resolvable:$true] %s43
      %49 = dma.hbm_to_vmem [thread:$0]  %s42, 48, %s44, [#allocation7], 16, 16, 1
    $region13: #{tpu_custom_call.1} parent=1 // pred_fallthru
      _
    // Predicated region
    $region14: #{tpu_custom_call.1} parent=1 // pred_check
      _
    $region15: #{tpu_custom_call.1} parent=1 // pred_check_branch
      %51 = sbr.rel (0) target = $region17
    $region16: #{tpu_custom_call.1} parent=1 // pred_region
      %53 = dma.done [#allocation4], 256
    $region17: #{tpu_custom_call.1} parent=1 // pred_fallthru
      _
    // Predicated region
    $region18: #{tpu_custom_call.1} parent=1 // pred_check
      _
    $region19: #{tpu_custom_call.1} parent=1 // pred_check_branch
      %55 = sbr.rel (0) target = $region21
    $region20: #{tpu_custom_call.1} parent=1 // pred_region
      %57 = dma.done [#allocation7], 1536
    $region21: #{tpu_custom_call.1} parent=1 // pred_fallthru
      _
    // Predicated region
    $region22: #{tpu_custom_call.1} parent=1 // pred_check
      _
    $region23: #{tpu_custom_call.1} parent=1 // pred_check_branch
      %59 = sbr.rel (0) target = $region25
    $region24: #{tpu_custom_call.1} parent=1 // pred_region
      %61 = dma.done [#allocation7], 48
    $region25: #{tpu_custom_call.1} parent=1 // pred_fallthru
      _
    %p62 = scmp.eq.s32.totalorder 0, 0
    // Predicated region
    $region26: #{tpu_custom_call.1} parent=1 // pred_check
      %p63 = pneg %p62
    $region27: #{tpu_custom_call.1} parent=1 // pred_check_branch
      %65 = sbr.rel (%p63) target = $region29
    $region28: #{tpu_custom_call.1} parent=1 // pred_region
      %vm66 = vcmask 261120
      %67 = vst.msk [vmem:[#allocation2] sm:$0xff] %vm66, 0.0
      %68 = vst.msk [vmem:[#allocation2 + $0x8] sm:$0xff] %vm66, 0.0
      %69 = vst.msk [vmem:[#allocation2 + $0x10] sm:$0xff] %vm66, 0.0
      %70 = vst.msk [vmem:[#allocation2 + $0x18] sm:$0xff] %vm66, 0.0
      %71 = vst.msk [vmem:[#allocation2 + $0x20] sm:$0xff] %vm66, 0.0
      %72 = vst.msk [vmem:[#allocation2 + $0x28] sm:$0xff] %vm66, 0.0
    $region29: #{tpu_custom_call.1} parent=1 // pred_fallthru
      _
    %v73 = vld [vmem:[#allocation3] sm:$0xff]
    %v74 = vld [vmem:[#allocation3 + $0x8] sm:$0xff]
    %v75 = vld [vmem:[#allocation2] sm:$0xff]
    %v76 = vld [vmem:[#allocation2 + $0x8] sm:$0xff]
    %v77 = vld [vmem:[#allocation6] sm:$0xff]
    %v78 = vld [vmem:[#allocation6 + $0x8] sm:$0xff]
    %v79 = vld [vmem:[#allocation6 + $0x10] sm:$0xff]
    %v80 = vld [vmem:[#allocation6 + $0x18] sm:$0xff]
    %vm81 = vcmask 261120
    %v83 = vsel %vm81, %v73, 0
    %v86 = vsel %vm81, %v74, 0
    %88 = vmatpush.msra.mxu0 0.0
    %89 = vmatpush.msra.mxu0 0.0
    %90 = vmatpush.msra.mxu0 0.0
    %91 = vmatpush.msra.mxu0 0.0
    %92 = vmatpush.msra.mxu0 0.0
    %93 = vmatpush.msra.mxu0 0.0
    %94 = vmatpush.msra.mxu0 0.0
    %95 = vmatpush.msra.mxu0 0.0
    %96 = vmatpush.msra.mxu0 0.0
    %97 = vmatpush.msra.mxu0 0.0
    %98 = vmatpush.msra.mxu0 0.0
    %99 = vmatpush.msra.mxu0 0.0
    %100 = vmatpush.msra.mxu0 %v80
    %101 = vmatpush.msra.mxu0 %v79
    %102 = vmatpush.msra.mxu0 %v78
    %103 = vmatpush.msra.mxu0 %v77
    %104 = vmatmul.f32.gmra.mxu0 %v83
    %v105 = vpop.f32.mrf.mxu0
    %v106 = vadd.f32 0.0, %v105
    %107 = vmatmul.f32.gmra.mxu0 %v86
    %v108 = vpop.f32.mrf.mxu0
    %v109 = vadd.f32 0.0, %v108
    %110 = vdwg.mxu0
    %v111 = vadd.f32 %v75, %v106
    %v112 = vadd.f32 %v76, %v109
    %113 = vst.msk [vmem:[#allocation2] sm:$0xff] %vm81, %v111
    %114 = vst.msk [vmem:[#allocation2 + $0x8] sm:$0xff] %vm81, %v112
    %s115 = scalar_lea.vmem [#allocation2], 16
    %v116 = vld [vmem:[%s115] sm:$0xff]
    %v117 = vld [vmem:[%s115 + $0x8] sm:$0xff]
    %s118 = scalar_lea.vmem [#allocation6], 32
    %v119 = vld [vmem:[%s118] sm:$0xff]
    %v120 = vld [vmem:[%s118 + $0x8] sm:$0xff]
    %v121 = vld [vmem:[%s118 + $0x10] sm:$0xff]
    %v122 = vld [vmem:[%s118 + $0x18] sm:$0xff]
    %123 = vmatpush.msra.mxu0 0.0
    %124 = vmatpush.msra.mxu0 0.0
    %125 = vmatpush.msra.mxu0 0.0
    %126 = vmatpush.msra.mxu0 0.0
    %127 = vmatpush.msra.mxu0 0.0
    %128 = vmatpush.msra.mxu0 0.0
    %129 = vmatpush.msra.mxu0 0.0
    %130 = vmatpush.msra.mxu0 0.0
    %131 = vmatpush.msra.mxu0 0.0
    %132 = vmatpush.msra.mxu0 0.0
    %133 = vmatpush.msra.mxu0 0.0
    %134 = vmatpush.msra.mxu0 0.0
    %135 = vmatpush.msra.mxu0 %v122
    %136 = vmatpush.msra.mxu0 %v121
    %137 = vmatpush.msra.mxu0 %v120
    %138 = vmatpush.msra.mxu0 %v119
    %139 = vmatmul.f32.gmra.mxu0 %v83
    %v140 = vpop.f32.mrf.mxu0
    %v141 = vadd.f32 0.0, %v140
    %142 = vmatmul.f32.gmra.mxu0 %v86
    %v143 = vpop.f32.mrf.mxu0
    %v144 = vadd.f32 0.0, %v143
    %145 = vdwg.mxu0
    %v146 = vadd.f32 %v116, %v141
    %v147 = vadd.f32 %v117, %v144
    %148 = vst.msk [vmem:[%s115] sm:$0xff] %vm81, %v146
    %149 = vst.msk [vmem:[%s115 + $0x8] sm:$0xff] %vm81, %v147
    %s150 = scalar_lea.vmem [#allocation2], 32
    %v151 = vld [vmem:[%s150] sm:$0xff]
    %v152 = vld [vmem:[%s150 + $0x8] sm:$0xff]
    %s153 = scalar_lea.vmem [#allocation6], 64
    %v154 = vld [vmem:[%s153] sm:$0xff]
    %v155 = vld [vmem:[%s153 + $0x8] sm:$0xff]
    %v156 = vld [vmem:[%s153 + $0x10] sm:$0xff]
    %v157 = vld [vmem:[%s153 + $0x18] sm:$0xff]
    %158 = vmatpush.msra.mxu0 0.0
    %159 = vmatpush.msra.mxu0 0.0
    %160 = vmatpush.msra.mxu0 0.0
    %161 = vmatpush.msra.mxu0 0.0
    %162 = vmatpush.msra.mxu0 0.0
    %163 = vmatpush.msra.mxu0 0.0
    %164 = vmatpush.msra.mxu0 0.0
    %165 = vmatpush.msra.mxu0 0.0
    %166 = vmatpush.msra.mxu0 0.0
    %167 = vmatpush.msra.mxu0 0.0
    %168 = vmatpush.msra.mxu0 0.0
    %169 = vmatpush.msra.mxu0 0.0
    %170 = vmatpush.msra.mxu0 %v157
    %171 = vmatpush.msra.mxu0 %v156
    %172 = vmatpush.msra.mxu0 %v155
    %173 = vmatpush.msra.mxu0 %v154
    %174 = vmatmul.f32.gmra.mxu0 %v83
    %v175 = vpop.f32.mrf.mxu0
    %v176 = vadd.f32 0.0, %v175
    %177 = vmatmul.f32.gmra.mxu0 %v86
    %v178 = vpop.f32.mrf.mxu0
    %v179 = vadd.f32 0.0, %v178
    %180 = vdwg.mxu0
    %v181 = vadd.f32 %v151, %v176
    %v182 = vadd.f32 %v152, %v179
    %183 = vst.msk [vmem:[%s150] sm:$0xff] %vm81, %v181
    %184 = vst.msk [vmem:[%s150 + $0x8] sm:$0xff] %vm81, %v182
    // Predicated region
    $region30: #{tpu_custom_call.1} parent=1 // pred_check
      %p185 = pneg %p62
    $region31: #{tpu_custom_call.1} parent=1 // pred_check_branch
      %187 = sbr.rel (%p185) target = $region33
    $region32: #{tpu_custom_call.1} parent=1 // pred_region
      %v188 = vld [vmem:[#allocation2] sm:$0xff]
      %v189 = vld [vmem:[#allocation2 + $0x8] sm:$0xff]
      %v190 = vld [vmem:[#allocation8] sm:$0x1]
      %v192 = vperm.slane %v190, 0
      %v194 = vadd.f32 %v188, %v192
      %v195 = vadd.f32 %v189, %v192
      %196 = vst.msk [vmem:[#allocation9] sm:$0xff] %vm81, %v194
      %197 = vst.msk [vmem:[#allocation9 + $0x8] sm:$0xff] %vm81, %v195
      %v198 = vld [vmem:[%s115] sm:$0xff]
      %v199 = vld [vmem:[%s115 + $0x8] sm:$0xff]
      %s200 = scalar_lea.vmem [#allocation8], 1
      %v201 = vld [vmem:[%s200] sm:$0x1]
      %v203 = vperm.slane %v201, 0
      %v205 = vadd.f32 %v198, %v203
      %v206 = vadd.f32 %v199, %v203
      %s207 = scalar_lea.vmem [#allocation9], 16
      %208 = vst.msk [vmem:[%s207] sm:$0xff] %vm81, %v205
      %209 = vst.msk [vmem:[%s207 + $0x8] sm:$0xff] %vm81, %v206
      %v210 = vld [vmem:[%s150] sm:$0xff]
      %v211 = vld [vmem:[%s150 + $0x8] sm:$0xff]
      %s212 = scalar_lea.vmem [#allocation8], 2
      %v213 = vld [vmem:[%s212] sm:$0x1]
      %v215 = vperm.slane %v213, 0
      %v217 = vadd.f32 %v210, %v215
      %v218 = vadd.f32 %v211, %v215
      %s219 = scalar_lea.vmem [#allocation9], 32
      %220 = vst.msk [vmem:[%s219] sm:$0xff] %vm81, %v217
      %221 = vst.msk [vmem:[%s219 + $0x8] sm:$0xff] %vm81, %v218
    $region33: #{tpu_custom_call.1} parent=1 // pred_fallthru
      _
    // Predicated region
    $region34: #{tpu_custom_call.1} parent=1 // pred_check
      _
    $region35: #{tpu_custom_call.1} parent=1 // pred_check_branch
      %223 = sbr.rel (0) target = $region37
    $region36: #{tpu_custom_call.1} parent=1 // pred_region
      %225 = vsyncadd [#allocation5], 0
      %s226 = sshll.u32 [#allocation9], 4
      %s227 = int_to_ptr.vmem [resolvable:$true] %s226
      %s228 = sshll.u32 %s3, 4
      %s229 = int_to_ptr.hbm [resolvable:$true] %s228
      %234 = dma.vmem_to_hbm [thread:$0]  %s227, 768, %s229, [#allocation5], 128, 128, 8
    $region37: #{tpu_custom_call.1} parent=1 // pred_fallthru
      _
    // Predicated region
    $region38: #{tpu_custom_call.1} parent=1 // pred_check
      _
    $region39: #{tpu_custom_call.1} parent=1 // pred_check_branch
      %236 = sbr.rel (0) target = $region41
    $region40: #{tpu_custom_call.1} parent=1 // pred_region
      %238 = dma.done [#allocation5], 768
    $region41: #{tpu_custom_call.1} parent=1 // pred_fallthru
      _
    %239 = vsyncpa [#allocation4], 1
    %240 = vsyncpa [#allocation7], 1
    %241 = vsyncpa [#allocation5], 1

</llo_original>
